<compile_context>
chip_gen: v6e
topology: v6e:2x2x1
jax: 0.10.0
libtpu: 0.0.40
codegen_flags: <defaults>
</compile_context>

<pallas_src>
import functools

import jax
import jax.numpy as jnp
from jax.experimental import pallas as pl
from jax.experimental.pallas import tpu as pltpu

BN_EPS = 1e-5
PAD = 256                        # lane/MXU-friendly padding multiple (v6e/v7x MXU 2x256^2)
VMEM_BUDGET = 40 * 1024 * 1024   # tile-selection budget: safe inside v7x's 64 MiB VMEM
VMEM_LIMIT = 48 * 1024 * 1024    # raises v5e's 16 MiB default, still < v7x physical


def mlp_kernel(x_ref, w1_ref, gb_ref, w2_ref, b2_ref, o_ref, acc_ref, *, th):
    """Grid = (proj tiles j [parallel], hidden tiles k [reduction]).

    One step: Linear1 chunk -> BN (full batch, per-feature, tile-local stats) -> ReLU
    -> accumulate the Linear2 partial product for proj tile j into a f32 scratch."""
    k = pl.program_id(1)

    @pl.when(k == 0)
    def _init():
        acc_ref[...] = jnp.zeros_like(acc_ref)

    # ---- Linear 1 (bf16 operands, f32 accumulation on the MXU). Bias omitted:
    # training-mode BatchNorm subtracts the per-feature batch mean right after, which
    # cancels any constant per-feature bias exactly.
    h = jnp.dot(x_ref[...], w1_ref[...], preferred_element_type=jnp.float32)  # (B, th)

    # ---- BatchNorm1d (training: biased batch stats over axis 0), folded affine.
    mean = jnp.mean(h, axis=0, keepdims=True)                  # (1, th)
    d = h - mean
    var = jnp.mean(d * d, axis=0, keepdims=True)               # (1, th)

    # gamma/beta live stacked in one resident (2, hidden_pad) array; slice this
    # hidden tile's chunk (start is a multiple of th >= 256, lane-aligned).
    start = pl.multiple_of(k * th, th)
    gamma = gb_ref[0:1, pl.ds(start, th)]                      # (1, th) f32
    beta = gb_ref[1:2, pl.ds(start, th)]                       # (1, th) f32

    s = gamma * jax.lax.rsqrt(var + BN_EPS)                    # rsqrt -> EUP slot
    h_act = jnp.maximum(d * s + beta, 0.0)                     # BN affine + ReLU (VPU)

    # ---- Linear 2 partial product over this hidden tile (bf16 MXU, f32 acc).
    acc_ref[...] += jnp.dot(h_act.astype(jnp.bfloat16), w2_ref[...],
                            preferred_element_type=jnp.float32)

    @pl.when(k == pl.num_programs(1) - 1)
    def _finalize():
        o_ref[...] = (acc_ref[...] + b2_ref[...]).astype(o_ref.dtype)


def _pick_hidden_tile(B, dim, hidden_pad, tn):
    """Largest th (multiple of 256, divides hidden_pad) whose working set fits the
    VMEM budget: double-buffered bf16 w1/w2 tiles + x + stacked gamma/beta + b2 +
    f32 accumulator + bf16 output tile."""
    for th in (2048, 1024, 512, 256):
        if hidden_pad % th != 0:
            continue
        est = (2 * dim * th * 2          # w1 tile, double-buffered, bf16
               + 2 * th * tn * 2         # w2 tile, double-buffered, bf16
               + 2 * B * dim * 2         # x, bf16 (constant index -> effectively 1 buf)
               + 2 * 2 * hidden_pad * 4  # stacked gamma/beta, f32, resident
               + 2 * tn * 4              # b2 tile, f32
               + B * tn * 4              # f32 accumulator scratch
               + 2 * B * tn * 2)         # output tile, bf16
        if est <= VMEM_BUDGET:
            return th
    return 256


def prepare_params(w1, b1, gamma, beta, w2, b2):
    """One-time parameter preparation (pad to 256 multiples, cast, stack gamma/beta).
    Do NOT call per forward pass -- that is exactly the HBM traffic the review flagged.

    Padding invariants (keep them): padded hidden features have gamma=beta=0, so BN
    output there is 0 (var=0 -> rsqrt(eps) is large but multiplied by gamma=0), ReLU
    keeps 0, and the matching zero w2 rows contribute nothing; padded proj columns are
    sliced off by the caller."""
    del b1  # canceled exactly by training-mode BN's batch-mean subtraction.

    dim, hidden = w1.shape
    proj = w2.shape[1]
    hidden_pad = pl.cdiv(hidden, PAD) * PAD
    proj_pad = pl.cdiv(proj, PAD) * PAD

    w1p = jnp.pad(w1, ((0, 0), (0, hidden_pad - hidden))).astype(jnp.bfloat16)
    gbp = jnp.pad(jnp.concatenate([gamma, beta], axis=0),
                  ((0, 0), (0, hidden_pad - hidden))).astype(jnp.float32)  # (2, hidden_pad)
    w2p = jnp.pad(w2, ((0, hidden_pad - hidden), (0, proj_pad - proj))).astype(jnp.bfloat16)
    b2p = jnp.pad(b2, ((0, 0), (0, proj_pad - proj))).astype(jnp.float32)
    return w1p, gbp, w2p, b2p, proj


def mlp_forward(x, w1p, gbp, w2p, b2p, *, proj, out_dtype=jnp.bfloat16):
    """x: (B, dim) any float dtype; remaining args from prepare_params().
    Returns (B, proj) in out_dtype."""
    B, dim = x.shape
    hidden_pad = w1p.shape[1]
    proj_pad = w2p.shape[1]

    xb = x.astype(jnp.bfloat16)

    tn = min(proj_pad, 256)                      # proj tile (parallel axis, MXU-sized)
    th = _pick_hidden_tile(B, dim, hidden_pad, tn)
    n_j = proj_pad // tn
    n_k = hidden_pad // th

    # TODO(synk): BN training statistics need the FULL batch resident per hidden tile,
    # so B is not tiled; very large B would need a two-pass (stats, then normalize) grid
    # or Welford cross-tile accumulation.
    # TODO(synk): pipeline_mode=pl.Buffered(3) on w1/w2 specs is worth a sweep in the
    # weight-streaming regime when the VMEM budget allows (v5e/v6e).
    out = pl.pallas_call(
        functools.partial(mlp_kernel, th=th),
        out_shape=jax.ShapeDtypeStruct((B, proj_pad), out_dtype),
        grid=(n_j, n_k),
        in_specs=[
            pl.BlockSpec((B, dim), lambda j, k: (0, 0)),            # x        (bf16)
            pl.BlockSpec((dim, th), lambda j, k: (0, k)),           # w1 tile  (bf16)
            pl.BlockSpec((2, hidden_pad), lambda j, k: (0, 0)),     # gamma/beta (f32, resident)
            pl.BlockSpec((th, tn), lambda j, k: (k, j)),            # w2 tile  (bf16)
            pl.BlockSpec((1, tn), lambda j, k: (0, j)),             # b2 tile  (f32)
        ],
        out_specs=pl.BlockSpec((B, tn), lambda j, k: (0, j)),
        scratch_shapes=[pltpu.VMEM((B, tn), jnp.float32)],
        compiler_params=pltpu.CompilerParams(
            # j (proj tiles) is embarrassingly parallel -> megacore sharding on v7x;
            # k (hidden tiles) is the Linear-2 reduction axis.
            dimension_semantics=("parallel", "arbitrary"),
            vmem_limit_bytes=VMEM_LIMIT,
        ),
    )(xb, w1p, gbp, w2p, b2p)

    return out[:, :proj]


def reference_mixed(x, w1, b1, gamma, beta, w2, b2):
    """Pure-JAX reference mirroring the kernel's precision recipe (bf16 GEMM operands,
    f32 accumulation / elementwise, Linear-1 bias canceled by BN)."""
    del b1
    h = jnp.dot(x.astype(jnp.bfloat16), w1.astype(jnp.bfloat16),
                preferred_element_type=jnp.float32)
    mean = jnp.mean(h, axis=0, keepdims=True)
    d = h - mean
    var = jnp.mean(d * d, axis=0, keepdims=True)
    s = gamma * jax.lax.rsqrt(var + BN_EPS)
    h_act = jnp.maximum(d * s + beta, 0.0)
    return jnp.dot(h_act.astype(jnp.bfloat16), w2.astype(jnp.bfloat16),
                   preferred_element_type=jnp.float32) + b2


def reference_f32(x, w1, b1, gamma, beta, w2, b2):
    """Full-precision reference of the original PyTorch module semantics (training mode)."""
    h = x @ w1 + b1
    mean = jnp.mean(h, axis=0, keepdims=True)
    var = jnp.mean((h - mean) ** 2, axis=0, keepdims=True)
    h = (h - mean) / jnp.sqrt(var + BN_EPS) * gamma + beta
    h = jnp.maximum(h, 0.0)
    return h @ w2 + b2


if __name__ == "__main__":
    # Small shapes consistent with the module: dim=32, hidden_size=64, projection_size=16.
    B, dim, hidden, proj = 8, 32, 64, 16

    key = jax.random.PRNGKey(0)
    kx, kw1, kb1, kw2, kb2 = jax.random.split(key, 5)

    x = jax.random.normal(kx, (B, dim), dtype=jnp.float32)

    # Deterministic parameter init (PyTorch-Linear-style uniform ranges).
    bound1 = 1.0 / (dim ** 0.5)
    w1 = jax.random.uniform(kw1, (dim, hidden), minval=-bound1, maxval=bound1, dtype=jnp.float32)
    b1 = jax.random.uniform(kb1, (1, hidden), minval=-bound1, maxval=bound1, dtype=jnp.float32)

    gamma = jnp.ones((1, hidden), dtype=jnp.float32)   # BatchNorm1d weight init
    beta = jnp.zeros((1, hidden), dtype=jnp.float32)   # BatchNorm1d bias init

    bound2 = 1.0 / (hidden ** 0.5)
    w2 = jax.random.uniform(kw2, (hidden, proj), minval=-bound2, maxval=bound2, dtype=jnp.float32)
    b2 = jax.random.uniform(kb2, (1, proj), minval=-bound2, maxval=bound2, dtype=jnp.float32)

    # One-time param prep (pad / cast / stack) -- hoisted out of the per-call path.
    w1p, gbp, w2p, b2p, proj_out = prepare_params(w1, b1, gamma, beta, w2, b2)
    w1p, gbp, w2p, b2p = jax.block_until_ready((w1p, gbp, w2p, b2p))

    fwd = jax.jit(functools.partial(mlp_forward, proj=proj_out, out_dtype=jnp.bfloat16))
    out = fwd(x, w1p, gbp, w2p, b2p)
    jax.block_until_ready(out)

    assert out.shape == (B, proj)
    out_f32 = out.astype(jnp.float32)

    # Tight check against a reference using the same mixed-precision recipe.
    ref_mix = reference_mixed(x, w1, b1, gamma, beta, w2, b2)
    assert jnp.allclose(out_f32, ref_mix, atol=1e-2, rtol=1e-2), \
        "mismatch vs mixed-precision reference"

    # Loose check against the full-f32 module semantics (bf16 operand rounding only).
    ref_f32 = reference_f32(x, w1, b1, gamma, beta, w2, b2)
    assert jnp.allclose(out_f32, ref_f32, atol=5e-2, rtol=5e-2), \
        "mismatch vs f32 reference"

    print("KERNEL_OK")
</pallas_src>

<mosaic_0001>
module attributes {stable_mosaic.version = 11 : i64} {
  func.func @mlp_kernel(%arg0: i32, %arg1: i32, %arg2: memref<8x32xbf16, #tpu.memory_space<vmem>>, %arg3: memref<32x256xbf16, #tpu.memory_space<vmem>>, %arg4: memref<2x256xf32, #tpu.memory_space<vmem>>, %arg5: memref<256x256xbf16, #tpu.memory_space<vmem>>, %arg6: memref<1x256xf32, #tpu.memory_space<vmem>>, %arg7: memref<8x256xbf16, #tpu.memory_space<vmem>>, %arg8: memref<8x256xf32, #tpu.memory_space<vmem>>) attributes {dimension_semantics = [#tpu.dimension_semantics<parallel>, #tpu.dimension_semantics<arbitrary>], iteration_bounds = array<i64: 1, 1>, scalar_prefetch = 0 : i64, scratch_operands = 1 : i64, tpu.core_type = #tpu.core_type<tc>, window_params = [{pipeline_mode = #tpu.pipeline_mode<synchronous>, transform_indices = @transform_0, window_bounds = array<i64: 8, 32>}, {transform_indices = @transform_1, window_bounds = array<i64: 32, 256>}, {pipeline_mode = #tpu.pipeline_mode<synchronous>, transform_indices = @transform_2, window_bounds = array<i64: 2, 256>}, {transform_indices = @transform_3, window_bounds = array<i64: 256, 256>}, {transform_indices = @transform_4, window_bounds = array<i64: 1, 256>}, {transform_indices = @transform_5, window_bounds = array<i64: 8, 256>}]} {
    %c0_i32 = arith.constant 0 : i32
    %0 = arith.cmpi eq, %arg1, %c0_i32 : i32
    %1 = arith.extui %0 : i1 to i32
    %c0_i32_0 = arith.constant 0 : i32
    %2 = arith.cmpi ne, %1, %c0_i32_0 : i32
    scf.if %2 {
      %cst_20 = arith.constant 0.000000e+00 : f32
      %42 = vector.broadcast %cst_20 : f32 to vector<8x256xf32>
      %c0_21 = arith.constant 0 : index
      %c0_22 = arith.constant 0 : index
      %43 = vector.load %arg8[%c0_21, %c0_22] : memref<8x256xf32, #tpu.memory_space<vmem>>, vector<8x256xf32>
      tpu.vector_store %arg8[%c0_21, %c0_22], %42 {strides = array<i32>} : memref<8x256xf32, #tpu.memory_space<vmem>>, vector<8x256xf32>,
    } else {
    }
    %c0 = arith.constant 0 : index
    %c0_1 = arith.constant 0 : index
    %3 = vector.load %arg2[%c0, %c0_1] : memref<8x32xbf16, #tpu.memory_space<vmem>>, vector<8x32xbf16>
    %c0_2 = arith.constant 0 : index
    %c0_3 = arith.constant 0 : index
    %4 = vector.load %arg3[%c0_2, %c0_3] : memref<32x256xbf16, #tpu.memory_space<vmem>>, vector<32x256xbf16>
    %cst = arith.constant dense<0.000000e+00> : vector<8x256xf32>
    %5 = tpu.matmul %3, %4, %cst {dimension_numbers = #tpu.dot_dimension_numbers<[1], [0], [0], [1], [0, 0, 1, 1], [], []>} : vector<8x32xbf16>, vector<32x256xbf16>, vector<8x256xf32> -> vector<8x256xf32>
    %cst_4 = arith.constant dense<0.000000e+00> : vector<256xf32>
    %6 = vector.multi_reduction <add>, %5, %cst_4 [0] : vector<8x256xf32> to vector<256xf32>
    %7 = vector.shape_cast %6 : vector<256xf32> to vector<1x256xf32>
    %cst_5 = arith.constant 8.000000e+00 : f32
    %8 = vector.broadcast %cst_5 : f32 to vector<1x256xf32>
    %9 = arith.divf %7, %8 : vector<1x256xf32>
    %10 = vector.broadcast %9 : vector<1x256xf32> to vector<8x256xf32>
    %11 = arith.subf %5, %10 : vector<8x256xf32>
    %12 = arith.mulf %11, %11 : vector<8x256xf32>
    %cst_6 = arith.constant dense<0.000000e+00> : vector<256xf32>
    %13 = vector.multi_reduction <add>, %12, %cst_6 [0] : vector<8x256xf32> to vector<256xf32>
    %14 = vector.shape_cast %13 : vector<256xf32> to vector<1x256xf32>
    %cst_7 = arith.constant 8.000000e+00 : f32
    %15 = vector.broadcast %cst_7 : f32 to vector<1x256xf32>
    %16 = arith.divf %14, %15 : vector<1x256xf32>
    %c256_i32 = arith.constant 256 : i32
    %17 = arith.muli %arg1, %c256_i32 : i32
    %18 = tpu.assume_multiple %17, 256 : i32
    %c0_8 = arith.constant 0 : index
    %19 = arith.index_cast %18 : i32 to index
    %20 = vector.load %arg4[%c0_8, %19] : memref<2x256xf32, #tpu.memory_space<vmem>>, vector<1x256xf32>
    %c1 = arith.constant 1 : index
    %21 = arith.index_cast %18 : i32 to index
    %22 = vector.load %arg4[%c1, %21] : memref<2x256xf32, #tpu.memory_space<vmem>>, vector<1x256xf32>
    %cst_9 = arith.constant 9.99999974E-6 : f32
    %23 = vector.broadcast %cst_9 : f32 to vector<1x256xf32>
    %24 = arith.addf %16, %23 : vector<1x256xf32>
    %25 = math.rsqrt %24 : vector<1x256xf32>
    %26 = arith.mulf %20, %25 : vector<1x256xf32>
    %27 = vector.broadcast %26 : vector<1x256xf32> to vector<8x256xf32>
    %28 = arith.mulf %11, %27 : vector<8x256xf32>
    %29 = vector.broadcast %22 : vector<1x256xf32> to vector<8x256xf32>
    %30 = arith.addf %28, %29 : vector<8x256xf32>
    %cst_10 = arith.constant 0.000000e+00 : f32
    %31 = vector.broadcast %cst_10 : f32 to vector<8x256xf32>
    %32 = arith.maximumf %30, %31 : vector<8x256xf32>
    %c0_11 = arith.constant 0 : index
    %c0_12 = arith.constant 0 : index
    %33 = vector.load %arg8[%c0_11, %c0_12] : memref<8x256xf32, #tpu.memory_space<vmem>>, vector<8x256xf32>
    %34 = arith.truncf %32 : vector<8x256xf32> to vector<8x256xbf16>
    %c0_13 = arith.constant 0 : index
    %c0_14 = arith.constant 0 : index
    %35 = vector.load %arg5[%c0_13, %c0_14] : memref<256x256xbf16, #tpu.memory_space<vmem>>, vector<256x256xbf16>
    %cst_15 = arith.constant dense<0.000000e+00> : vector<8x256xf32>
    %36 = tpu.matmul %34, %35, %cst_15 {dimension_numbers = #tpu.dot_dimension_numbers<[1], [0], [0], [1], [0, 0, 1, 1], [], []>} : vector<8x256xbf16>, vector<256x256xbf16>, vector<8x256xf32> -> vector<8x256xf32>
    %37 = arith.addf %33, %36 : vector<8x256xf32>
    %c0_16 = arith.constant 0 : index
    %c0_17 = arith.constant 0 : index
    %38 = vector.load %arg8[%c0_16, %c0_17] : memref<8x256xf32, #tpu.memory_space<vmem>>, vector<8x256xf32>
    tpu.vector_store %arg8[%c0_16, %c0_17], %37 {strides = array<i32>} : memref<8x256xf32, #tpu.memory_space<vmem>>, vector<8x256xf32>,
    %c0_i32_18 = arith.constant 0 : i32
    %39 = arith.cmpi eq, %arg1, %c0_i32_18 : i32
    %40 = arith.extui %39 : i1 to i32
    %c0_i32_19 = arith.constant 0 : i32
    %41 = arith.cmpi ne, %40, %c0_i32_19 : i32
    scf.if %41 {
      %c0_20 = arith.constant 0 : index
      %c0_21 = arith.constant 0 : index
      %42 = vector.load %arg8[%c0_20, %c0_21] : memref<8x256xf32, #tpu.memory_space<vmem>>, vector<8x256xf32>
      %c0_22 = arith.constant 0 : index
      %c0_23 = arith.constant 0 : index
      %43 = vector.load %arg6[%c0_22, %c0_23] : memref<1x256xf32, #tpu.memory_space<vmem>>, vector<1x256xf32>
      %44 = vector.broadcast %43 : vector<1x256xf32> to vector<8x256xf32>
      %45 = arith.addf %42, %44 : vector<8x256xf32>
      %46 = arith.truncf %45 : vector<8x256xf32> to vector<8x256xbf16>
      %c0_24 = arith.constant 0 : index
      %c0_25 = arith.constant 0 : index
      %47 = vector.load %arg7[%c0_24, %c0_25] : memref<8x256xbf16, #tpu.memory_space<vmem>>, vector<8x256xbf16>
      tpu.vector_store %arg7[%c0_24, %c0_25], %46 {strides = array<i32>} : memref<8x256xbf16, #tpu.memory_space<vmem>>, vector<8x256xbf16>,
    } else {
    }
    return
  }
  func.func @transform_0(%arg0: i32, %arg1: i32) -> (i32, i32) {
    %c0_i32 = arith.constant 0 : i32
    %c0_i32_0 = arith.constant 0 : i32
    %c0_i32_1 = arith.constant 0 : i32
    return %c0_i32, %c0_i32_0 : i32, i32
  }
  func.func @transform_1(%arg0: i32, %arg1: i32) -> (i32, i32) {
    %c0_i32 = arith.constant 0 : i32
    %c0_i32_0 = arith.constant 0 : i32
    return %c0_i32, %arg1 : i32, i32
  }
  func.func @transform_2(%arg0: i32, %arg1: i32) -> (i32, i32) {
    %c0_i32 = arith.constant 0 : i32
    %c0_i32_0 = arith.constant 0 : i32
    %c0_i32_1 = arith.constant 0 : i32
    return %c0_i32, %c0_i32_0 : i32, i32
  }
  func.func @transform_3(%arg0: i32, %arg1: i32) -> (i32, i32) {
    %c0_i32 = arith.constant 0 : i32
    return %arg1, %arg0 : i32, i32
  }
  func.func @transform_4(%arg0: i32, %arg1: i32) -> (i32, i32) {
    %c0_i32 = arith.constant 0 : i32
    %c0_i32_0 = arith.constant 0 : i32
    return %c0_i32, %arg0 : i32, i32
  }
  func.func @transform_5(%arg0: i32, %arg1: i32) -> (i32, i32) {
    %c0_i32 = arith.constant 0 : i32
    %c0_i32_0 = arith.constant 0 : i32
    return %c0_i32, %arg0 : i32, i32
  }
}

</mosaic_0001>

<llo_original>
// kernel: mlp_forward.1
$region0: #{mlp_forward.1}
  #allocation0 [shape = 'u32[]', space=smem, size = 0x4, offset = 0x4, fixed_abs, tag = 'smem constant byte address 0x4 - core index']
  #allocation1 [shape = 'u32[144,128]{1,0:T(1,128)}', space=vmem, size = 0x12000, scoped, tag = 'internal scratch']
  #allocation2 [shape = 'f32[8,256]{1,0:T(8,128)}', space=vmem, size = 0x2000, scoped, tag = 'scratch operand']
  %s0 = inlined_call_operand.vmem [shape: bf16[8,32], index: 0, kind: input, shape index: {}]
  %s1 = inlined_call_operand.hbm [shape: bf16[32,256], index: 1, kind: input, shape index: {}]
  %s2 = inlined_call_operand.vmem [shape: f32[2,256], index: 2, kind: input, shape index: {}]
  %s3 = inlined_call_operand.hbm [shape: bf16[256,256], index: 3, kind: input, shape index: {}]
  %s4 = inlined_call_operand.vmem [shape: f32[1,256], index: 4, kind: input, shape index: {}]
  %s5 = inlined_call_operand.vmem [shape: bf16[8,256], index: 5, kind: output, shape index: {}]
  %s6 = sld [smem:[#allocation0]]
  $region46: #{mlp_forward.1} parent=0
    _
  %s8 = ssub.s32 1, %s6
  %s9 = scalar_select 0, %s8, %s6
  $region1: #{mlp_forward.1} parent=0
    #allocation3 [shape = 'u8[16384]{0}', space=vmem, size = 0x4000, scoped, tag = 'input window, operand 1, single buffered']
    #allocation4 [shape = 's32[1]{0}', space=sflag, size = 0x4, scoped, tag = 'scoped memory for mlp_forward.1']
    #allocation5 [shape = 'u8[131072]{0}', space=vmem, size = 0x20000, scoped, tag = 'input window, operand 3, single buffered']
    #allocation6 [shape = 's32[1]{0}', space=sflag, size = 0x4, scoped, tag = 'scoped memory for mlp_forward.1']
    %10 = vsyncpa [#allocation4], 0
    %11 = vsyncpa [#allocation6], 0
    // Predicated region
    $region2: #{mlp_forward.1} parent=1 // pred_check
      _
    $region3: #{mlp_forward.1} parent=1 // pred_check_branch
      %13 = sbr.rel (0) target = $region5
    $region4: #{mlp_forward.1} parent=1 // pred_region
      _
    $region5: #{mlp_forward.1} parent=1 // pred_fallthru
      _
    // Predicated region
    $region6: #{mlp_forward.1} parent=1 // pred_check
      _
    $region7: #{mlp_forward.1} parent=1 // pred_check_branch
      %15 = sbr.rel (0) target = $region9
    $region8: #{mlp_forward.1} parent=1 // pred_region
      %s17 = ssub.s32 512, 512
      %18 = vsyncadd [#allocation4], %s17
      %s19 = sshll.u32 [#allocation3], 4
      %s20 = int_to_ptr.vmem [resolvable:$true] %s19
      %25 = dma.hbm_to_vmem [thread:$0]  %s1, 512, %s20, [#allocation4], 128, 128, 8
    $region9: #{mlp_forward.1} parent=1 // pred_fallthru
      _
    // Predicated region
    $region10: #{mlp_forward.1} parent=1 // pred_check
      _
    $region11: #{mlp_forward.1} parent=1 // pred_check_branch
      %27 = sbr.rel (0) target = $region13
    $region12: #{mlp_forward.1} parent=1 // pred_region
      _
    $region13: #{mlp_forward.1} parent=1 // pred_fallthru
      _
    // Predicated region
    $region14: #{mlp_forward.1} parent=1 // pred_check
      _
    $region15: #{mlp_forward.1} parent=1 // pred_check_branch
      %29 = sbr.rel (0) target = $region17
    $region16: #{mlp_forward.1} parent=1 // pred_region
      %s31 = ssub.s32 4096, 4096
      %32 = vsyncadd [#allocation6], %s31
      %s33 = sshll.u32 [#allocation5], 4
      %s34 = int_to_ptr.vmem [resolvable:$true] %s33
      %39 = dma.hbm_to_vmem [thread:$0]  %s3, 4096, %s34, [#allocation6], 128, 128, 8
    $region17: #{mlp_forward.1} parent=1 // pred_fallthru
      _
    // Predicated region
    $region18: #{mlp_forward.1} parent=1 // pred_check
      _
    $region19: #{mlp_forward.1} parent=1 // pred_check_branch
      %41 = sbr.rel (0) target = $region21
    $region20: #{mlp_forward.1} parent=1 // pred_region
      _
    $region21: #{mlp_forward.1} parent=1 // pred_fallthru
      _
    // Predicated region
    $region22: #{mlp_forward.1} parent=1 // pred_check
      _
    $region23: #{mlp_forward.1} parent=1 // pred_check_branch
      %43 = sbr.rel (0) target = $region25
    $region24: #{mlp_forward.1} parent=1 // pred_region
      %44 = dma.done [#allocation4], 512
    $region25: #{mlp_forward.1} parent=1 // pred_fallthru
      _
    // Predicated region
    $region26: #{mlp_forward.1} parent=1 // pred_check
      _
    $region27: #{mlp_forward.1} parent=1 // pred_check_branch
      %46 = sbr.rel (0) target = $region29
    $region28: #{mlp_forward.1} parent=1 // pred_region
      %47 = dma.done [#allocation6], 4096
    $region29: #{mlp_forward.1} parent=1 // pred_fallthru
      _
    %p49 = scmp.eq.s32.totalorder 0, 0
    // Predicated region
    $region30: #{mlp_forward.1} parent=1 // pred_check
      %p50 = pneg %p49
    $region31: #{mlp_forward.1} parent=1 // pred_check_branch
      %52 = sbr.rel (%p50) target = $region33
    $region32: #{mlp_forward.1} parent=1 // pred_region
      %53 = vst [vmem:[#allocation2] sm:$0xff] 0.0
      %54 = vst [vmem:[#allocation2 + $0x8] sm:$0xff] 0.0
    $region33: #{mlp_forward.1} parent=1 // pred_fallthru
      _
    %v55 = vld [vmem:[%s0] sm:$0xf]
    %v56 = vld [vmem:[#allocation3] sm:$0xff]
    %v57 = vld [vmem:[#allocation3 + $0x8] sm:$0xff]
    %v58 = vld [vmem:[#allocation3 + $0x10] sm:$0xff]
    %v59 = vld [vmem:[#allocation3 + $0x18] sm:$0xff]
    %v64 = vunpack.c.l.b16 %v56
    %v65 = vunpack.c.h.b16 %v56
    %v66 = vunpack.c.l.b16 %v57
    %v67 = vunpack.c.h.b16 %v57
    %v68 = vunpack.c.l.b16 %v58
    %v69 = vunpack.c.h.b16 %v58
    %v70 = vunpack.c.l.b16 %v59
    %v71 = vunpack.c.h.b16 %v59
    %v72 = vpack.c.b16 %v66, %v64
    %v73 = vpack.c.b16 %v67, %v65
    %v74 = vpack.c.b16 %v70, %v68
    %v75 = vpack.c.b16 %v71, %v69
    %vm80 = vcmask 261120
    %v82 = vsel %vm80, %v55, 0
    %84 = vmatprep.subr.bf16.mxu0 0
    %85 = vmatpush1.bf16.msra.mxu0 0
    %86 = vmatprep.subr.bf16.mxu0 0
    %87 = vmatpush1.bf16.msra.mxu0 0
    %88 = vmatprep.subr.bf16.mxu0 0
    %89 = vmatpush1.bf16.msra.mxu0 0
    %90 = vmatprep.subr.bf16.mxu0 0
    %91 = vmatpush1.bf16.msra.mxu0 0
    %92 = vmatprep.subr.bf16.mxu0 0
    %93 = vmatpush1.bf16.msra.mxu0 0
    %94 = vmatprep.subr.bf16.mxu0 0
    %95 = vmatpush1.bf16.msra.mxu0 0
    %96 = vmatprep.subr.bf16.mxu0 %v75
    %97 = vmatpush1.bf16.msra.mxu0 %v74
    %98 = vmatprep.subr.bf16.mxu0 %v73
    %99 = vmatpush1.bf16.msra.mxu0 %v72
    %100 = vmatprep.subr.bf16.mxu0 0
    %101 = vmatpush2.bf16.msra.mxu0 0
    %102 = vmatprep.subr.bf16.mxu0 0
    %103 = vmatpush2.bf16.msra.mxu0 0
    %104 = vmatprep.subr.bf16.mxu0 0
    %105 = vmatpush2.bf16.msra.mxu0 0
    %106 = vmatprep.subr.bf16.mxu0 0
    %107 = vmatpush2.bf16.msra.mxu0 0
    %108 = vmatprep.subr.bf16.mxu0 0
    %109 = vmatpush2.bf16.msra.mxu0 0
    %110 = vmatprep.subr.bf16.mxu0 0
    %111 = vmatpush2.bf16.msra.mxu0 0
    %112 = vmatprep.subr.bf16.mxu0 0
    %113 = vmatpush2.bf16.msra.mxu0 0
    %114 = vmatprep.subr.bf16.mxu0 0
    %115 = vmatpush2.bf16.msra.mxu0 0
    %116 = vmatprep.mubr.bf16.mxu0 0
    %117 = vmatmul.mubr.bf16.gmra.mxu0 %v82
    %v118 = vpop.f32.mrf.mxu0
    %v119 = vadd.f32 0.0, %v118
    %v120 = vpop.f32.mrf.mxu0
    %v121 = vadd.f32 0.0, %v120
    %v122 = vpop.f32.mrf.mxu0
    %v123 = vpop.f32.mrf.mxu0
    %124 = vdwg.mxu0
    %v125 = vrot.slane %v119, 4
    %v126 = vadd.f32 %v119, %v125
    %v127 = vrot.slane %v126, 2
    %v128 = vadd.f32 %v126, %v127
    %v129 = vrot.slane %v128, 1
    %v130 = vadd.f32 %v128, %v129
    %v131 = vrot.slane %v121, 4
    %v132 = vadd.f32 %v121, %v131
    %v133 = vrot.slane %v132, 2
    %v134 = vadd.f32 %v132, %v133
    %v135 = vrot.slane %v134, 1
    %v136 = vadd.f32 %v134, %v135
    %v137 = vrcp.pop 8.0
    %v138 = vmul.f32 %v130, %v137
    %v139 = vmul.f32 %v136, %v137
    %v140 = vsub.f32 %v119, %v138
    %v141 = vsub.f32 %v121, %v139
    %v142 = vmul.f32 %v140, %v140
    %v143 = vmul.f32 %v141, %v141
    %v144 = vrot.slane %v142, 4
    %v145 = vadd.f32 %v142, %v144
    %v146 = vrot.slane %v145, 2
    %v147 = vadd.f32 %v145, %v146
    %v148 = vrot.slane %v147, 1
    %v149 = vadd.f32 %v147, %v148
    %v150 = vrot.slane %v143, 4
    %v151 = vadd.f32 %v143, %v150
    %v152 = vrot.slane %v151, 2
    %v153 = vadd.f32 %v151, %v152
    %v154 = vrot.slane %v153, 1
    %v155 = vadd.f32 %v153, %v154
    %v156 = vmul.f32 %v149, %v137
    %v157 = vmul.f32 %v155, %v137
    %s158 = smul.u32 0, 256
    %s159 = sshra.s32 %s158, 7
    %s160 = sand.u32 %s158, 127
    %s161 = smul.addr %s159, 2
    %s162 = scalar_lea.vmem %s2, %s161
    %v163 = vld [vmem:[%s162] ss:$2 sm:$0x3]
    %s164 = scalar_lea.vmem %s162, 1
    %v165 = vld [vmem:[%s164] ss:$2 sm:$0x3]
    %v166 = vadd.f32 %v156, 1e-05
    %v167 = vadd.f32 %v157, 1e-05
    %v168 = vrsqrt.pop %v166
    %v169 = vrsqrt.pop %v167
    %v172 = vcombine.low %v168, %v169
    %v174 = vunpack.c.l.s4 1966171168
    %v175 = vunpack.c.0.s8 %v174
    %v176 = vlaneseq
    %v177 = vshrl.u32 %v176, 7
    %v178 = vsub.s32 %v175, %v177
    %v179 = vrot.slane %v172, %v178
    %v181 = vunpack.c.l.s4 1966171168
    %v182 = vunpack.c.0.s8 %v181
    %v183 = vlaneseq
    %v184 = vshrl.u32 %v183, 7
    %v185 = vsub.s32 %v182, %v184
    %v186 = vrot.slane %v179, %v185
    %v188 = vmul.f32 %v163, %v186
    %v190 = vlaneseq
    %v191 = vshrl.u32 %v190, 7
    %v192 = vsub.s32 0, %v191
    %v193 = vrot.slane %v188, %v192
    %v194 = vlaneseq
    %v195 = vshrl.u32 %v194, 7
    %v196 = vsub.s32 1, %v195
    %v197 = vrot.slane %v188, %v196
    %v200 = vmul.f32 %v140, %v193
    %v201 = vmul.f32 %v141, %v197
    %v203 = vlaneseq
    %v204 = vshrl.u32 %v203, 7
    %v205 = vsub.s32 0, %v204
    %v206 = vrot.slane %v165, %v205
    %v207 = vlaneseq
    %v208 = vshrl.u32 %v207, 7
    %v209 = vsub.s32 1, %v208
    %v210 = vrot.slane %v165, %v209
    %v213 = vadd.f32 %v200, %v206
    %v214 = vadd.f32 %v201, %v210
    %v215 = vmax.f32 %v213, 0.0
    %v216 = vmax.f32 %v214, 0.0
    %v217 = vld [vmem:[#allocation2] sm:$0xff]
    %v218 = vld [vmem:[#allocation2 + $0x8] sm:$0xff]
    %v219 = vpack.c.bf16 %v215, %v215
    %v220 = vpack.c.bf16 %v216, %v216
    %v221 = vld [vmem:[#allocation5] sm:$0xff]
    %v222 = vld [vmem:[#allocation5 + $0x8] sm:$0xff]
    %v223 = vld [vmem:[#allocation5 + $0x10] sm:$0xff]
    %v224 = vld [vmem:[#allocation5 + $0x18] sm:$0xff]
    %v225 = vld [vmem:[#allocation5 + $0x20] sm:$0xff]
    %v226 = vld [vmem:[#allocation5 + $0x28] sm:$0xff]
    %v227 = vld [vmem:[#allocation5 + $0x30] sm:$0xff]
    %v228 = vld [vmem:[#allocation5 + $0x38] sm:$0xff]
    %v229 = vld [vmem:[#allocation5 + $0x40] sm:$0xff]
    %v230 = vld [vmem:[#allocation5 + $0x48] sm:$0xff]
    %v231 = vld [vmem:[#allocation5 + $0x50] sm:$0xff]
    %v232 = vld [vmem:[#allocation5 + $0x58] sm:$0xff]
    %v233 = vld [vmem:[#allocation5 + $0x60] sm:$0xff]
    %v234 = vld [vmem:[#allocation5 + $0x68] sm:$0xff]
    %v235 = vld [vmem:[#allocation5 + $0x70] sm:$0xff]
    %v236 = vld [vmem:[#allocation5 + $0x78] sm:$0xff]
    %v237 = vld [vmem:[#allocation5 + $0x80] sm:$0xff]
    %v238 = vld [vmem:[#allocation5 + $0x88] sm:$0xff]
    %v239 = vld [vmem:[#allocation5 + $0x90] sm:$0xff]
    %v240 = vld [vmem:[#allocation5 + $0x98] sm:$0xff]
    %v241 = vld [vmem:[#allocation5 + $0xa0] sm:$0xff]
    %v242 = vld [vmem:[#allocation5 + $0xa8] sm:$0xff]
    %v243 = vld [vmem:[#allocation5 + $0xb0] sm:$0xff]
    %v244 = vld [vmem:[#allocation5 + $0xb8] sm:$0xff]
    %v245 = vld [vmem:[#allocation5 + $0xc0] sm:$0xff]
    %v246 = vld [vmem:[#allocation5 + $0xc8] sm:$0xff]
    %v247 = vld [vmem:[#allocation5 + $0xd0] sm:$0xff]
    %v248 = vld [vmem:[#allocation5 + $0xd8] sm:$0xff]
    %v249 = vld [vmem:[#allocation5 + $0xe0] sm:$0xff]
    %v250 = vld [vmem:[#allocation5 + $0xe8] sm:$0xff]
    %v251 = vld [vmem:[#allocation5 + $0xf0] sm:$0xff]
    %v252 = vld [vmem:[#allocation5 + $0xf8] sm:$0xff]
    %v285 = vunpack.c.l.b16 %v221
    %v286 = vunpack.c.h.b16 %v221
    %v287 = vunpack.c.l.b16 %v222
    %v288 = vunpack.c.h.b16 %v222
    %v289 = vunpack.c.l.b16 %v223
    %v290 = vunpack.c.h.b16 %v223
    %v291 = vunpack.c.l.b16 %v224
    %v292 = vunpack.c.h.b16 %v224
    %v293 = vunpack.c.l.b16 %v225
    %v294 = vunpack.c.h.b16 %v225
    %v295 = vunpack.c.l.b16 %v226
    %v296 = vunpack.c.h.b16 %v226
    %v297 = vunpack.c.l.b16 %v227
    %v298 = vunpack.c.h.b16 %v227
    %v299 = vunpack.c.l.b16 %v228
    %v300 = vunpack.c.h.b16 %v228
    %v301 = vunpack.c.l.b16 %v229
    %v302 = vunpack.c.h.b16 %v229
    %v303 = vunpack.c.l.b16 %v230
    %v304 = vunpack.c.h.b16 %v230
    %v305 = vunpack.c.l.b16 %v231
    %v306 = vunpack.c.h.b16 %v231
    %v307 = vunpack.c.l.b16 %v232
    %v308 = vunpack.c.h.b16 %v232
    %v309 = vunpack.c.l.b16 %v233
    %v310 = vunpack.c.h.b16 %v233
    %v311 = vunpack.c.l.b16 %v234
    %v312 = vunpack.c.h.b16 %v234
    %v313 = vunpack.c.l.b16 %v235
    %v314 = vunpack.c.h.b16 %v235
    %v315 = vunpack.c.l.b16 %v236
    %v316 = vunpack.c.h.b16 %v236
    %v317 = vunpack.c.l.b16 %v237
    %v318 = vunpack.c.h.b16 %v237
    %v319 = vunpack.c.l.b16 %v238
    %v320 = vunpack.c.h.b16 %v238
    %v321 = vunpack.c.l.b16 %v239
    %v322 = vunpack.c.h.b16 %v239
    %v323 = vunpack.c.l.b16 %v240
    %v324 = vunpack.c.h.b16 %v240
    %v325 = vunpack.c.l.b16 %v241
    %v326 = vunpack.c.h.b16 %v241
    %v327 = vunpack.c.l.b16 %v242
    %v328 = vunpack.c.h.b16 %v242
    %v329 = vunpack.c.l.b16 %v243
    %v330 = vunpack.c.h.b16 %v243
    %v331 = vunpack.c.l.b16 %v244
    %v332 = vunpack.c.h.b16 %v244
    %v333 = vunpack.c.l.b16 %v245
    %v334 = vunpack.c.h.b16 %v245
    %v335 = vunpack.c.l.b16 %v246
    %v336 = vunpack.c.h.b16 %v246
    %v337 = vunpack.c.l.b16 %v247
    %v338 = vunpack.c.h.b16 %v247
    %v339 = vunpack.c.l.b16 %v248
    %v340 = vunpack.c.h.b16 %v248
    %v341 = vunpack.c.l.b16 %v249
    %v342 = vunpack.c.h.b16 %v249
    %v343 = vunpack.c.l.b16 %v250
    %v344 = vunpack.c.h.b16 %v250
    %v345 = vunpack.c.l.b16 %v251
    %v346 = vunpack.c.h.b16 %v251
    %v347 = vunpack.c.l.b16 %v252
    %v348 = vunpack.c.h.b16 %v252
    %v349 = vpack.c.b16 %v287, %v285
    %v350 = vpack.c.b16 %v288, %v286
    %v351 = vpack.c.b16 %v291, %v289
    %v352 = vpack.c.b16 %v292, %v290
    %v353 = vpack.c.b16 %v295, %v293
    %v354 = vpack.c.b16 %v296, %v294
    %v355 = vpack.c.b16 %v299, %v297
    %v356 = vpack.c.b16 %v300, %v298
    %v357 = vpack.c.b16 %v303, %v301
    %v358 = vpack.c.b16 %v304, %v302
    %v359 = vpack.c.b16 %v307, %v305
    %v360 = vpack.c.b16 %v308, %v306
    %v361 = vpack.c.b16 %v311, %v309
    %v362 = vpack.c.b16 %v312, %v310
    %v363 = vpack.c.b16 %v315, %v313
    %v364 = vpack.c.b16 %v316, %v314
    %v365 = vpack.c.b16 %v319, %v317
    %v366 = vpack.c.b16 %v320, %v318
    %v367 = vpack.c.b16 %v323, %v321
    %v368 = vpack.c.b16 %v324, %v322
    %v369 = vpack.c.b16 %v327, %v325
    %v370 = vpack.c.b16 %v328, %v326
    %v371 = vpack.c.b16 %v331, %v329
    %v372 = vpack.c.b16 %v332, %v330
    %v373 = vpack.c.b16 %v335, %v333
    %v374 = vpack.c.b16 %v336, %v334
    %v375 = vpack.c.b16 %v339, %v337
    %v376 = vpack.c.b16 %v340, %v338
    %v377 = vpack.c.b16 %v343, %v341
    %v378 = vpack.c.b16 %v344, %v342
    %v379 = vpack.c.b16 %v347, %v345
    %v380 = vpack.c.b16 %v348, %v346
    %413 = vmatprep.subr.bf16.mxu0 %v364
    %414 = vmatpush1.bf16.msra.mxu0 %v363
    %415 = vmatprep.subr.bf16.mxu0 %v362
    %416 = vmatpush1.bf16.msra.mxu0 %v361
    %417 = vmatprep.subr.bf16.mxu0 %v360
    %418 = vmatpush1.bf16.msra.mxu0 %v359
    %419 = vmatprep.subr.bf16.mxu0 %v358
    %420 = vmatpush1.bf16.msra.mxu0 %v357
    %421 = vmatprep.subr.bf16.mxu0 %v356
    %422 = vmatpush1.bf16.msra.mxu0 %v355
    %423 = vmatprep.subr.bf16.mxu0 %v354
    %424 = vmatpush1.bf16.msra.mxu0 %v353
    %425 = vmatprep.subr.bf16.mxu0 %v352
    %426 = vmatpush1.bf16.msra.mxu0 %v351
    %427 = vmatprep.subr.bf16.mxu0 %v350
    %428 = vmatpush1.bf16.msra.mxu0 %v349
    %429 = vmatprep.subr.bf16.mxu0 %v380
    %430 = vmatpush2.bf16.msra.mxu0 %v379
    %431 = vmatprep.subr.bf16.mxu0 %v378
    %432 = vmatpush2.bf16.msra.mxu0 %v377
    %433 = vmatprep.subr.bf16.mxu0 %v376
    %434 = vmatpush2.bf16.msra.mxu0 %v375
    %435 = vmatprep.subr.bf16.mxu0 %v374
    %436 = vmatpush2.bf16.msra.mxu0 %v373
    %437 = vmatprep.subr.bf16.mxu0 %v372
    %438 = vmatpush2.bf16.msra.mxu0 %v371
    %439 = vmatprep.subr.bf16.mxu0 %v370
    %440 = vmatpush2.bf16.msra.mxu0 %v369
    %441 = vmatprep.subr.bf16.mxu0 %v368
    %442 = vmatpush2.bf16.msra.mxu0 %v367
    %443 = vmatprep.subr.bf16.mxu0 %v366
    %444 = vmatpush2.bf16.msra.mxu0 %v365
    %445 = vmatprep.mubr.bf16.mxu0 %v220
    %446 = vmatmul.mubr.bf16.gmra.mxu0 %v219
    %v447 = vpop.f32.mrf.mxu0
    %v448 = vadd.f32 0.0, %v447
    %v449 = vpop.f32.mrf.mxu0
    %v450 = vadd.f32 0.0, %v449
    %v451 = vpop.f32.mrf.mxu0
    %v452 = vpop.f32.mrf.mxu0
    %453 = vdwg.mxu0
    %v454 = vadd.f32 %v217, %v448
    %v455 = vadd.f32 %v218, %v450
    %456 = vst [vmem:[#allocation2] sm:$0xff] %v454
    %457 = vst [vmem:[#allocation2 + $0x8] sm:$0xff] %v455
    // Predicated region
    $region34: #{mlp_forward.1} parent=1 // pred_check
      %p458 = pneg %p49
    $region35: #{mlp_forward.1} parent=1 // pred_check_branch
      %460 = sbr.rel (%p458) target = $region37
    $region36: #{mlp_forward.1} parent=1 // pred_region
      %v461 = vld [vmem:[#allocation2] sm:$0xff]
      %v462 = vld [vmem:[#allocation2 + $0x8] sm:$0xff]
      %v463 = vld [vmem:[%s4] sm:$0x3]
      %v465 = vlaneseq
      %v466 = vshrl.u32 %v465, 7
      %v467 = vsub.s32 0, %v466
      %v468 = vrot.slane %v463, %v467
      %v469 = vlaneseq
      %v470 = vshrl.u32 %v469, 7
      %v471 = vsub.s32 1, %v470
      %v472 = vrot.slane %v463, %v471
      %v475 = vadd.f32 %v461, %v468
      %v476 = vadd.f32 %v462, %v472
      %v477 = vpack.c.bf16 %v475, %v475
      %v478 = vpack.c.bf16 %v476, %v476
      %v481 = vunpack.c.l.b16 %v477
      %v482 = vunpack.c.l.b16 %v478
      %v483 = vpack.c.b16 %v482, %v481
      %485 = vst [vmem:[%s5] sm:$0xff] %v483
    $region37: #{mlp_forward.1} parent=1 // pred_fallthru
      _
    // Predicated region
    $region38: #{mlp_forward.1} parent=1 // pred_check
      _
    $region39: #{mlp_forward.1} parent=1 // pred_check_branch
      %487 = sbr.rel (0) target = $region41
    $region40: #{mlp_forward.1} parent=1 // pred_region
      _
    $region41: #{mlp_forward.1} parent=1 // pred_fallthru
      _
    // Predicated region
    $region42: #{mlp_forward.1} parent=1 // pred_check
      _
    $region43: #{mlp_forward.1} parent=1 // pred_check_branch
      %489 = sbr.rel (0) target = $region45
    $region44: #{mlp_forward.1} parent=1 // pred_region
      _
    $region45: #{mlp_forward.1} parent=1 // pred_fallthru
      _
    %490 = vsyncpa [#allocation4], 1
    %491 = vsyncpa [#allocation6], 1

</llo_original>
